<compile_context>
chip_gen: v6e
topology: v6e:2x2x1
jax: 0.10.0
libtpu: 0.0.40
codegen_flags: <defaults>
</compile_context>

<pallas_src>
import functools

import jax
import jax.numpy as jnp
import numpy as np
from jax.experimental import pallas as pl
from jax.experimental.pallas import tpu as pltpu

LANE = 128                    # pad every feature dim to a multiple of the lane width
MAX_TB = 4096                 # max batch-tile rows (double-buffered ~12.5 MiB f32)
VMEM_LIMIT_BYTES = 32 * 1024 * 1024

# dtypes that are DMA'd as-is (cast to f32 inside the kernel); everything else
# is cast to f32 in the wrapper.
_PASS_THROUGH_DTYPES = {
    np.dtype(jnp.float32), np.dtype(jnp.bfloat16),
    np.dtype(jnp.int8), np.dtype(jnp.uint8),
    np.dtype(jnp.int32), np.dtype(jnp.uint32),
}


def _round_up(x, m):
    return ((x + m - 1) // m) * m


def _sublane_for(dtype):
    # second-minor tile granularity scales with dtype packing: 8 (4B), 16 (2B), 32 (1B)
    return {1: 32, 2: 16, 4: 8}.get(np.dtype(dtype).itemsize, 8)


def mlp_kernel(x_ref, w1_ref, b1_ref, w2_ref, b2_ref, w3_ref, b3_ref, o_ref):
    # x_ref: (TB, IN_PAD) in its natural dtype; w*: (in_pad, out_pad) lane-dense;
    # b*: (1, out_pad). All padded weight cols/rows and padded biases are zero,
    # so padded lanes carry exact zeros through ReLU and contribute nothing.
    x = x_ref[...].astype(jnp.float32)

    h1 = jnp.dot(x, w1_ref[...], preferred_element_type=jnp.float32) + b1_ref[...]
    h1 = jnp.maximum(h1, 0.0)

    h2 = jnp.dot(h1, w2_ref[...], preferred_element_type=jnp.float32) + b2_ref[...]
    h2 = jnp.maximum(h2, 0.0)

    out = jnp.dot(h2, w3_ref[...], preferred_element_type=jnp.float32) + b3_ref[...]
    o_ref[...] = out.astype(o_ref.dtype)


def prepare_params(params):
    """One-time prep: transpose PyTorch (out,in) weights to (in,out) and
    zero-pad every feature dim up to a multiple of 128 (lane-dense)."""
    (w1, b1), (w2, b2), (w3, b3) = params
    in_dim = int(w1.shape[1])
    hid = int(w1.shape[0])
    out_dim = int(w3.shape[0])

    in_pad = _round_up(in_dim, LANE)
    hid_pad = _round_up(hid, LANE)
    out_pad = _round_up(out_dim, LANE)

    def pad_w(wt, rows, cols):
        z = jnp.zeros((rows, cols), jnp.float32)
        return z.at[: wt.shape[0], : wt.shape[1]].set(wt.astype(jnp.float32))

    def pad_b(b, cols):
        z = jnp.zeros((1, cols), jnp.float32)
        return z.at[0, : b.shape[0]].set(b.astype(jnp.float32))

    return dict(
        w1=pad_w(w1.T, in_pad, hid_pad), b1=pad_b(b1, hid_pad),
        w2=pad_w(w2.T, hid_pad, hid_pad), b2=pad_b(b2, hid_pad),
        w3=pad_w(w3.T, hid_pad, out_pad), b3=pad_b(b3, out_pad),
        in_dim=in_dim, out_dim=out_dim,
    )


def _pick_batch_tiling(batch, sub):
    """Balanced tiles: minimal total padding, every tile the same size."""
    b_min = _round_up(batch, sub)
    if b_min <= MAX_TB:
        return b_min, b_min                     # (tb, b_pad): single grid step
    n_tiles = -(-b_min // MAX_TB)
    tb = _round_up(-(-b_min // n_tiles), sub)
    return tb, tb * n_tiles


@functools.partial(jax.jit, static_argnames=("in_dim", "out_dim"))
def _forward_impl(obs, w1, b1, w2, b2, w3, b3, *, in_dim, out_dim):
    batch = obs.shape[0]
    x = obs.reshape(batch, -1)                   # == torch obs.view(batch, -1)
    if np.dtype(x.dtype) not in _PASS_THROUGH_DTYPES:
        x = x.astype(jnp.float32)

    in_pad, hid_pad = w1.shape
    out_pad = w3.shape[1]
    x_itemsize = np.dtype(x.dtype).itemsize

    sub = _sublane_for(x.dtype)
    tb, b_pad = _pick_batch_tiling(batch, sub)
    pad_rows = b_pad - batch
    pad_cols = in_pad - x.shape[1]
    if pad_rows or pad_cols:                     # gated: no copy for aligned batches
        x = jnp.pad(x, ((0, pad_rows), (0, pad_cols)))

    n_tiles = b_pad // tb
    weight_bytes = 4 * ((in_pad + hid_pad) * hid_pad + hid_pad * out_pad
                        + 2 * hid_pad + out_pad)
    cost = pl.CostEstimate(
        flops=2 * b_pad * (in_pad * hid_pad + hid_pad * hid_pad + hid_pad * out_pad),
        transcendentals=0,
        bytes_accessed=b_pad * in_pad * x_itemsize + b_pad * out_pad * 4 + weight_bytes,
    )

    const = lambda i: (0, 0)                     # weights/biases stay VMEM-resident

    logits_pad = pl.pallas_call(
        mlp_kernel,
        out_shape=jax.ShapeDtypeStruct((b_pad, out_pad), jnp.float32),
        grid=(n_tiles,),
        in_specs=[
            pl.BlockSpec((tb, in_pad), lambda i: (i, 0)),
            pl.BlockSpec((in_pad, hid_pad), const),
            pl.BlockSpec((1, hid_pad), const),
            pl.BlockSpec((hid_pad, hid_pad), const),
            pl.BlockSpec((1, hid_pad), const),
            pl.BlockSpec((hid_pad, out_pad), const),
            pl.BlockSpec((1, out_pad), const),
        ],
        out_specs=pl.BlockSpec((tb, out_pad), lambda i: (i, 0)),
        compiler_params=pltpu.CompilerParams(
            dimension_semantics=("parallel",),
            vmem_limit_bytes=VMEM_LIMIT_BYTES,
        ),
        cost_estimate=cost,
    )(x, w1, b1, w2, b2, w3, b3)

    # TODO(synk): for DQN serving, fuse the argmax/max-Q consumer into the kernel
    # so only a per-row scalar is written back instead of the padded (B,128) slab.
    return logits_pad[:batch, :out_dim]


def mlp16x16_forward(obs, prepped):
    """obs: (B, 16, 16) or (B, 256), float or integer dtype. Returns (logits, state=None)."""
    logits = _forward_impl(
        obs, prepped["w1"], prepped["b1"], prepped["w2"], prepped["b2"],
        prepped["w3"], prepped["b3"],
        in_dim=prepped["in_dim"], out_dim=prepped["out_dim"])
    return logits, None


def init_params(key, state_shape, action_shape):
    """Deterministic init mimicking nn.Linear's U(-1/sqrt(fan_in), 1/sqrt(fan_in))."""
    in_dim = int(np.prod(state_shape))
    out_dim = int(np.prod(action_shape))
    dims = [(in_dim, 16), (16, 16), (16, out_dim)]
    params = []
    for (fan_in, fan_out) in dims:
        key, kw, kb = jax.random.split(key, 3)
        bound = 1.0 / np.sqrt(fan_in)
        w = jax.random.uniform(kw, (fan_out, fan_in), jnp.float32, -bound, bound)
        b = jax.random.uniform(kb, (fan_out,), jnp.float32, -bound, bound)
        params.append((w, b))
    return params


def _ref_forward(obs, params):
    x = obs.reshape(obs.shape[0], -1).astype(jnp.float32)
    (w1, b1), (w2, b2), (w3, b3) = params
    h = jnp.maximum(x @ w1.T + b1, 0.0)
    h = jnp.maximum(h @ w2.T + b2, 0.0)
    return h @ w3.T + b3


if __name__ == "__main__":
    key = jax.random.PRNGKey(0)
    state_shape = (16, 16)   # 16x16 observation grid -> 256 flat features
    action_shape = (4,)      # 4 discrete actions
    n_act = int(np.prod(action_shape))

    k_obs, k_obs2, k_obs3, k_params = jax.random.split(key, 4)
    params = init_params(k_params, state_shape, action_shape)
    prepped = prepare_params(params)   # transpose + pad once, off the hot path

    # 1) Small f32 batch: single grid step, batch padded to one sublane (8 rows).
    obs = jax.random.normal(k_obs, (2,) + state_shape, dtype=jnp.float32)
    logits, state = mlp16x16_forward(obs, prepped)
    logits = jax.block_until_ready(logits)
    np.testing.assert_allclose(
        np.asarray(logits), np.asarray(_ref_forward(obs, params)),
        rtol=1e-5, atol=1e-5)
    assert logits.shape == (2, n_act)
    assert state is None

    # 2) Ragged large f32 batch: exercises balanced 2-tile grid (4100 -> 2x2056)
    #    with only 12 rows of tail padding (previously would have padded to 8192).
    obs2 = jax.random.normal(k_obs2, (4100,) + state_shape, dtype=jnp.float32)
    logits2, _ = mlp16x16_forward(obs2, prepped)
    logits2 = jax.block_until_ready(logits2)
    np.testing.assert_allclose(
        np.asarray(logits2), np.asarray(_ref_forward(obs2, params)),
        rtol=1e-5, atol=1e-5)
    assert logits2.shape == (4100, n_act)

    # 3) Integer (int8) observation grid: DMA'd narrow (4x fewer input bytes),
    #    cast to f32 inside the kernel; math identical to the f32 reference.
    obs3 = jax.random.randint(k_obs3, (64,) + state_shape, 0, 5).astype(jnp.int8)
    logits3, _ = mlp16x16_forward(obs3, prepped)
    logits3 = jax.block_until_ready(logits3)
    np.testing.assert_allclose(
        np.asarray(logits3), np.asarray(_ref_forward(obs3, params)),
        rtol=1e-5, atol=1e-5)
    assert logits3.shape == (64, n_act)

    print("KERNEL_OK")
</pallas_src>

<mosaic_0001>
module attributes {stable_mosaic.version = 11 : i64} {
  func.func @mlp_kernel(%arg0: i32, %arg1: memref<8x256xf32, #tpu.memory_space<vmem>>, %arg2: memref<256x128xf32, #tpu.memory_space<vmem>>, %arg3: memref<1x128xf32, #tpu.memory_space<vmem>>, %arg4: memref<128x128xf32, #tpu.memory_space<vmem>>, %arg5: memref<1x128xf32, #tpu.memory_space<vmem>>, %arg6: memref<128x128xf32, #tpu.memory_space<vmem>>, %arg7: memref<1x128xf32, #tpu.memory_space<vmem>>, %arg8: memref<8x128xf32, #tpu.memory_space<vmem>>) attributes {dimension_semantics = [#tpu.dimension_semantics<parallel>], iteration_bounds = array<i64: 1>, scalar_prefetch = 0 : i64, scratch_operands = 0 : i64, tpu.core_type = #tpu.core_type<tc>, window_params = [{transform_indices = @transform_0, window_bounds = array<i64: 8, 256>}, {pipeline_mode = #tpu.pipeline_mode<synchronous>, transform_indices = @transform_1, window_bounds = array<i64: 256, 128>}, {pipeline_mode = #tpu.pipeline_mode<synchronous>, transform_indices = @transform_2, window_bounds = array<i64: 1, 128>}, {pipeline_mode = #tpu.pipeline_mode<synchronous>, transform_indices = @transform_3, window_bounds = array<i64: 128, 128>}, {pipeline_mode = #tpu.pipeline_mode<synchronous>, transform_indices = @transform_4, window_bounds = array<i64: 1, 128>}, {pipeline_mode = #tpu.pipeline_mode<synchronous>, transform_indices = @transform_5, window_bounds = array<i64: 128, 128>}, {pipeline_mode = #tpu.pipeline_mode<synchronous>, transform_indices = @transform_6, window_bounds = array<i64: 1, 128>}, {transform_indices = @transform_7, window_bounds = array<i64: 8, 128>}]} {
    %c0 = arith.constant 0 : index
    %c0_0 = arith.constant 0 : index
    %0 = vector.load %arg1[%c0, %c0_0] : memref<8x256xf32, #tpu.memory_space<vmem>>, vector<8x256xf32>
    %c0_1 = arith.constant 0 : index
    %c0_2 = arith.constant 0 : index
    %1 = vector.load %arg2[%c0_1, %c0_2] : memref<256x128xf32, #tpu.memory_space<vmem>>, vector<256x128xf32>
    %cst = arith.constant dense<0.000000e+00> : vector<8x128xf32>
    %2 = tpu.matmul %0, %1, %cst {dimension_numbers = #tpu.dot_dimension_numbers<[1], [0], [0], [1], [0, 0, 1, 1], [], []>} : vector<8x256xf32>, vector<256x128xf32>, vector<8x128xf32> -> vector<8x128xf32>
    %c0_3 = arith.constant 0 : index
    %c0_4 = arith.constant 0 : index
    %3 = vector.load %arg3[%c0_3, %c0_4] : memref<1x128xf32, #tpu.memory_space<vmem>>, vector<1x128xf32>
    %4 = vector.broadcast %3 : vector<1x128xf32> to vector<8x128xf32>
    %5 = arith.addf %2, %4 : vector<8x128xf32>
    %cst_5 = arith.constant 0.000000e+00 : f32
    %6 = vector.broadcast %cst_5 : f32 to vector<8x128xf32>
    %7 = arith.maximumf %5, %6 : vector<8x128xf32>
    %c0_6 = arith.constant 0 : index
    %c0_7 = arith.constant 0 : index
    %8 = vector.load %arg4[%c0_6, %c0_7] : memref<128x128xf32, #tpu.memory_space<vmem>>, vector<128x128xf32>
    %cst_8 = arith.constant dense<0.000000e+00> : vector<8x128xf32>
    %9 = tpu.matmul %7, %8, %cst_8 {dimension_numbers = #tpu.dot_dimension_numbers<[1], [0], [0], [1], [0, 0, 1, 1], [], []>} : vector<8x128xf32>, vector<128x128xf32>, vector<8x128xf32> -> vector<8x128xf32>
    %c0_9 = arith.constant 0 : index
    %c0_10 = arith.constant 0 : index
    %10 = vector.load %arg5[%c0_9, %c0_10] : memref<1x128xf32, #tpu.memory_space<vmem>>, vector<1x128xf32>
    %11 = vector.broadcast %10 : vector<1x128xf32> to vector<8x128xf32>
    %12 = arith.addf %9, %11 : vector<8x128xf32>
    %cst_11 = arith.constant 0.000000e+00 : f32
    %13 = vector.broadcast %cst_11 : f32 to vector<8x128xf32>
    %14 = arith.maximumf %12, %13 : vector<8x128xf32>
    %c0_12 = arith.constant 0 : index
    %c0_13 = arith.constant 0 : index
    %15 = vector.load %arg6[%c0_12, %c0_13] : memref<128x128xf32, #tpu.memory_space<vmem>>, vector<128x128xf32>
    %cst_14 = arith.constant dense<0.000000e+00> : vector<8x128xf32>
    %16 = tpu.matmul %14, %15, %cst_14 {dimension_numbers = #tpu.dot_dimension_numbers<[1], [0], [0], [1], [0, 0, 1, 1], [], []>} : vector<8x128xf32>, vector<128x128xf32>, vector<8x128xf32> -> vector<8x128xf32>
    %c0_15 = arith.constant 0 : index
    %c0_16 = arith.constant 0 : index
    %17 = vector.load %arg7[%c0_15, %c0_16] : memref<1x128xf32, #tpu.memory_space<vmem>>, vector<1x128xf32>
    %18 = vector.broadcast %17 : vector<1x128xf32> to vector<8x128xf32>
    %19 = arith.addf %16, %18 : vector<8x128xf32>
    %c0_17 = arith.constant 0 : index
    %c0_18 = arith.constant 0 : index
    %20 = vector.load %arg8[%c0_17, %c0_18] : memref<8x128xf32, #tpu.memory_space<vmem>>, vector<8x128xf32>
    tpu.vector_store %arg8[%c0_17, %c0_18], %19 {strides = array<i32>} : memref<8x128xf32, #tpu.memory_space<vmem>>, vector<8x128xf32>,
    return
  }
  func.func @transform_0(%arg0: i32) -> (i32, i32) {
    %c0_i32 = arith.constant 0 : i32
    %c0_i32_0 = arith.constant 0 : i32
    return %arg0, %c0_i32 : i32, i32
  }
  func.func @transform_1(%arg0: i32) -> (i32, i32) {
    %c0_i32 = arith.constant 0 : i32
    %c0_i32_0 = arith.constant 0 : i32
    %c0_i32_1 = arith.constant 0 : i32
    return %c0_i32, %c0_i32_0 : i32, i32
  }
  func.func @transform_2(%arg0: i32) -> (i32, i32) {
    %c0_i32 = arith.constant 0 : i32
    %c0_i32_0 = arith.constant 0 : i32
    %c0_i32_1 = arith.constant 0 : i32
    return %c0_i32, %c0_i32_0 : i32, i32
  }
  func.func @transform_3(%arg0: i32) -> (i32, i32) {
    %c0_i32 = arith.constant 0 : i32
    %c0_i32_0 = arith.constant 0 : i32
    %c0_i32_1 = arith.constant 0 : i32
    return %c0_i32, %c0_i32_0 : i32, i32
  }
  func.func @transform_4(%arg0: i32) -> (i32, i32) {
    %c0_i32 = arith.constant 0 : i32
    %c0_i32_0 = arith.constant 0 : i32
    %c0_i32_1 = arith.constant 0 : i32
    return %c0_i32, %c0_i32_0 : i32, i32
  }
  func.func @transform_5(%arg0: i32) -> (i32, i32) {
    %c0_i32 = arith.constant 0 : i32
    %c0_i32_0 = arith.constant 0 : i32
    %c0_i32_1 = arith.constant 0 : i32
    return %c0_i32, %c0_i32_0 : i32, i32
  }
  func.func @transform_6(%arg0: i32) -> (i32, i32) {
    %c0_i32 = arith.constant 0 : i32
    %c0_i32_0 = arith.constant 0 : i32
    %c0_i32_1 = arith.constant 0 : i32
    return %c0_i32, %c0_i32_0 : i32, i32
  }
  func.func @transform_7(%arg0: i32) -> (i32, i32) {
    %c0_i32 = arith.constant 0 : i32
    %c0_i32_0 = arith.constant 0 : i32
    return %arg0, %c0_i32 : i32, i32
  }
}

</mosaic_0001>

<llo_original>
// kernel: _forward_impl.1
$region0: #{_forward_impl.1}
  #allocation0 [shape = 'u32[]', space=smem, size = 0x4, offset = 0x4, fixed_abs, tag = 'smem constant byte address 0x4 - core index']
  #allocation1 [shape = 'u32[144,128]{1,0:T(1,128)}', space=vmem, size = 0x12000, scoped, tag = 'internal scratch']
  %s0 = inlined_call_operand.vmem [shape: f32[8,256], index: 0, kind: input, shape index: {}]
  %s1 = inlined_call_operand.hbm [shape: f32[256,128], index: 1, kind: input, shape index: {}]
  %s2 = inlined_call_operand.vmem [shape: f32[1,128], index: 2, kind: input, shape index: {}]
  %s3 = inlined_call_operand.hbm [shape: f32[128,128], index: 3, kind: input, shape index: {}]
  %s4 = inlined_call_operand.vmem [shape: f32[1,128], index: 4, kind: input, shape index: {}]
  %s5 = inlined_call_operand.hbm [shape: f32[128,128], index: 5, kind: input, shape index: {}]
  %s6 = inlined_call_operand.vmem [shape: f32[1,128], index: 6, kind: input, shape index: {}]
  %s7 = inlined_call_operand.vmem [shape: f32[8,128], index: 7, kind: output, shape index: {}]
  %s8 = sld [smem:[#allocation0]]
  $region50: #{_forward_impl.1} parent=0
    _
  %s10 = ssub.s32 1, %s8
  %s11 = scalar_select 0, %s10, %s8
  $region1: #{_forward_impl.1} parent=0
    #allocation2 [shape = 'u8[131072]{0}', space=vmem, size = 0x20000, scoped, tag = 'input window, operand 1, single buffered']
    #allocation3 [shape = 's32[1]{0}', space=sflag, size = 0x4, scoped, tag = 'scoped memory for _forward_impl.1']
    #allocation4 [shape = 'u8[65536]{0}', space=vmem, size = 0x10000, scoped, tag = 'input window, operand 3, single buffered']
    #allocation5 [shape = 's32[1]{0}', space=sflag, size = 0x4, scoped, tag = 'scoped memory for _forward_impl.1']
    #allocation6 [shape = 'u8[65536]{0}', space=vmem, size = 0x10000, scoped, tag = 'input window, operand 5, single buffered']
    %12 = vsyncpa [#allocation3], 0
    %13 = vsyncpa [#allocation5], 0
    // Predicated region
    $region2: #{_forward_impl.1} parent=1 // pred_check
      _
    $region3: #{_forward_impl.1} parent=1 // pred_check_branch
      %15 = sbr.rel (0) target = $region5
    $region4: #{_forward_impl.1} parent=1 // pred_region
      _
    $region5: #{_forward_impl.1} parent=1 // pred_fallthru
      _
    // Predicated region
    $region6: #{_forward_impl.1} parent=1 // pred_check
      _
    $region7: #{_forward_impl.1} parent=1 // pred_check_branch
      %17 = sbr.rel (0) target = $region9
    $region8: #{_forward_impl.1} parent=1 // pred_region
      %s19 = ssub.s32 4096, 4096
      %20 = vsyncadd [#allocation3], %s19
      %s21 = sshll.u32 [#allocation2], 4
      %s22 = int_to_ptr.vmem [resolvable:$true] %s21
      %27 = dma.hbm_to_vmem [thread:$0]  %s1, 4096, %s22, [#allocation3], 128, 128, 8
    $region9: #{_forward_impl.1} parent=1 // pred_fallthru
      _
    // Predicated region
    $region10: #{_forward_impl.1} parent=1 // pred_check
      _
    $region11: #{_forward_impl.1} parent=1 // pred_check_branch
      %29 = sbr.rel (0) target = $region13
    $region12: #{_forward_impl.1} parent=1 // pred_region
      _
    $region13: #{_forward_impl.1} parent=1 // pred_fallthru
      _
    // Predicated region
    $region14: #{_forward_impl.1} parent=1 // pred_check
      _
    $region15: #{_forward_impl.1} parent=1 // pred_check_branch
      %31 = sbr.rel (0) target = $region17
    $region16: #{_forward_impl.1} parent=1 // pred_region
      %s33 = ssub.s32 2048, 2048
      %34 = vsyncadd [#allocation5], %s33
      %s35 = sshll.u32 [#allocation4], 4
      %s36 = int_to_ptr.vmem [resolvable:$true] %s35
      %41 = dma.hbm_to_vmem [thread:$0]  %s3, 2048, %s36, [#allocation5], 128, 128, 8
    $region17: #{_forward_impl.1} parent=1 // pred_fallthru
      _
    // Predicated region
    $region18: #{_forward_impl.1} parent=1 // pred_check
      _
    $region19: #{_forward_impl.1} parent=1 // pred_check_branch
      %43 = sbr.rel (0) target = $region21
    $region20: #{_forward_impl.1} parent=1 // pred_region
      _
    $region21: #{_forward_impl.1} parent=1 // pred_fallthru
      _
    // Predicated region
    $region22: #{_forward_impl.1} parent=1 // pred_check
      _
    $region23: #{_forward_impl.1} parent=1 // pred_check_branch
      %45 = sbr.rel (0) target = $region25
    $region24: #{_forward_impl.1} parent=1 // pred_region
      %s47 = ssub.s32 2048, 2048
      %48 = vsyncadd [#allocation5], %s47
      %s49 = sshll.u32 [#allocation6], 4
      %s50 = int_to_ptr.vmem [resolvable:$true] %s49
      %55 = dma.hbm_to_vmem [thread:$0]  %s5, 2048, %s50, [#allocation5], 128, 128, 8
    $region25: #{_forward_impl.1} parent=1 // pred_fallthru
      _
    // Predicated region
    $region26: #{_forward_impl.1} parent=1 // pred_check
      _
    $region27: #{_forward_impl.1} parent=1 // pred_check_branch
      %57 = sbr.rel (0) target = $region29
    $region28: #{_forward_impl.1} parent=1 // pred_region
      _
    $region29: #{_forward_impl.1} parent=1 // pred_fallthru
      _
    // Predicated region
    $region30: #{_forward_impl.1} parent=1 // pred_check
      _
    $region31: #{_forward_impl.1} parent=1 // pred_check_branch
      %59 = sbr.rel (0) target = $region33
    $region32: #{_forward_impl.1} parent=1 // pred_region
      %60 = dma.done [#allocation3], 4096
    $region33: #{_forward_impl.1} parent=1 // pred_fallthru
      _
    // Predicated region
    $region34: #{_forward_impl.1} parent=1 // pred_check
      _
    $region35: #{_forward_impl.1} parent=1 // pred_check_branch
      %62 = sbr.rel (0) target = $region37
    $region36: #{_forward_impl.1} parent=1 // pred_region
      %63 = dma.done [#allocation5], 2048
    $region37: #{_forward_impl.1} parent=1 // pred_fallthru
      _
    // Predicated region
    $region38: #{_forward_impl.1} parent=1 // pred_check
      _
    $region39: #{_forward_impl.1} parent=1 // pred_check_branch
      %65 = sbr.rel (0) target = $region41
    $region40: #{_forward_impl.1} parent=1 // pred_region
      %66 = dma.done [#allocation5], 2048
    $region41: #{_forward_impl.1} parent=1 // pred_fallthru
      _
    %v67 = vld [vmem:[%s0] sm:$0xff]
    %v68 = vld [vmem:[%s0 + $0x8] sm:$0xff]
    %v69 = vld [vmem:[#allocation2] sm:$0xff]
    %v70 = vld [vmem:[#allocation2 + $0x8] sm:$0xff]
    %v71 = vld [vmem:[#allocation2 + $0x10] sm:$0xff]
    %v72 = vld [vmem:[#allocation2 + $0x18] sm:$0xff]
    %v73 = vld [vmem:[#allocation2 + $0x20] sm:$0xff]
    %v74 = vld [vmem:[#allocation2 + $0x28] sm:$0xff]
    %v75 = vld [vmem:[#allocation2 + $0x30] sm:$0xff]
    %v76 = vld [vmem:[#allocation2 + $0x38] sm:$0xff]
    %v77 = vld [vmem:[#allocation2 + $0x40] sm:$0xff]
    %v78 = vld [vmem:[#allocation2 + $0x48] sm:$0xff]
    %v79 = vld [vmem:[#allocation2 + $0x50] sm:$0xff]
    %v80 = vld [vmem:[#allocation2 + $0x58] sm:$0xff]
    %v81 = vld [vmem:[#allocation2 + $0x60] sm:$0xff]
    %v82 = vld [vmem:[#allocation2 + $0x68] sm:$0xff]
    %v83 = vld [vmem:[#allocation2 + $0x70] sm:$0xff]
    %v84 = vld [vmem:[#allocation2 + $0x78] sm:$0xff]
    %v85 = vld [vmem:[#allocation2 + $0x80] sm:$0xff]
    %v86 = vld [vmem:[#allocation2 + $0x88] sm:$0xff]
    %v87 = vld [vmem:[#allocation2 + $0x90] sm:$0xff]
    %v88 = vld [vmem:[#allocation2 + $0x98] sm:$0xff]
    %v89 = vld [vmem:[#allocation2 + $0xa0] sm:$0xff]
    %v90 = vld [vmem:[#allocation2 + $0xa8] sm:$0xff]
    %v91 = vld [vmem:[#allocation2 + $0xb0] sm:$0xff]
    %v92 = vld [vmem:[#allocation2 + $0xb8] sm:$0xff]
    %v93 = vld [vmem:[#allocation2 + $0xc0] sm:$0xff]
    %v94 = vld [vmem:[#allocation2 + $0xc8] sm:$0xff]
    %v95 = vld [vmem:[#allocation2 + $0xd0] sm:$0xff]
    %v96 = vld [vmem:[#allocation2 + $0xd8] sm:$0xff]
    %v97 = vld [vmem:[#allocation2 + $0xe0] sm:$0xff]
    %v98 = vld [vmem:[#allocation2 + $0xe8] sm:$0xff]
    %v99 = vld [vmem:[#allocation2 + $0xf0] sm:$0xff]
    %v100 = vld [vmem:[#allocation2 + $0xf8] sm:$0xff]
    %v101 = vld [vmem:[%s2] sm:$0x1]
    %v103 = vlaneseq
    %v104 = vshrl.u32 %v103, 7
    %v105 = vsub.s32 0, %v104
    %v106 = vrot.slane %v101, %v105
    %108 = vmatprep.subr.mxu0 0.0
    %109 = vmatpush1.msra.mxu0 %v84
    %110 = vmatprep.subr.mxu0 0.0
    %111 = vmatpush1.msra.mxu0 %v83
    %112 = vmatprep.subr.mxu0 0.0
    %113 = vmatpush1.msra.mxu0 %v82
    %114 = vmatprep.subr.mxu0 0.0
    %115 = vmatpush1.msra.mxu0 %v81
    %116 = vmatprep.subr.mxu0 0.0
    %117 = vmatpush1.msra.mxu0 %v80
    %118 = vmatprep.subr.mxu0 0.0
    %119 = vmatpush1.msra.mxu0 %v79
    %120 = vmatprep.subr.mxu0 0.0
    %121 = vmatpush1.msra.mxu0 %v78
    %122 = vmatprep.subr.mxu0 0.0
    %123 = vmatpush1.msra.mxu0 %v77
    %124 = vmatprep.subr.mxu0 0.0
    %125 = vmatpush1.msra.mxu0 %v76
    %126 = vmatprep.subr.mxu0 0.0
    %127 = vmatpush1.msra.mxu0 %v75
    %128 = vmatprep.subr.mxu0 0.0
    %129 = vmatpush1.msra.mxu0 %v74
    %130 = vmatprep.subr.mxu0 0.0
    %131 = vmatpush1.msra.mxu0 %v73
    %132 = vmatprep.subr.mxu0 0.0
    %133 = vmatpush1.msra.mxu0 %v72
    %134 = vmatprep.subr.mxu0 0.0
    %135 = vmatpush1.msra.mxu0 %v71
    %136 = vmatprep.subr.mxu0 0.0
    %137 = vmatpush1.msra.mxu0 %v70
    %138 = vmatprep.subr.mxu0 0.0
    %139 = vmatpush1.msra.mxu0 %v69
    %140 = vmatprep.subr.mxu0 0.0
    %141 = vmatpush2.msra.mxu0 %v100
    %142 = vmatprep.subr.mxu0 0.0
    %143 = vmatpush2.msra.mxu0 %v99
    %144 = vmatprep.subr.mxu0 0.0
    %145 = vmatpush2.msra.mxu0 %v98
    %146 = vmatprep.subr.mxu0 0.0
    %147 = vmatpush2.msra.mxu0 %v97
    %148 = vmatprep.subr.mxu0 0.0
    %149 = vmatpush2.msra.mxu0 %v96
    %150 = vmatprep.subr.mxu0 0.0
    %151 = vmatpush2.msra.mxu0 %v95
    %152 = vmatprep.subr.mxu0 0.0
    %153 = vmatpush2.msra.mxu0 %v94
    %154 = vmatprep.subr.mxu0 0.0
    %155 = vmatpush2.msra.mxu0 %v93
    %156 = vmatprep.subr.mxu0 0.0
    %157 = vmatpush2.msra.mxu0 %v92
    %158 = vmatprep.subr.mxu0 0.0
    %159 = vmatpush2.msra.mxu0 %v91
    %160 = vmatprep.subr.mxu0 0.0
    %161 = vmatpush2.msra.mxu0 %v90
    %162 = vmatprep.subr.mxu0 0.0
    %163 = vmatpush2.msra.mxu0 %v89
    %164 = vmatprep.subr.mxu0 0.0
    %165 = vmatpush2.msra.mxu0 %v88
    %166 = vmatprep.subr.mxu0 0.0
    %167 = vmatpush2.msra.mxu0 %v87
    %168 = vmatprep.subr.mxu0 0.0
    %169 = vmatpush2.msra.mxu0 %v86
    %170 = vmatprep.subr.mxu0 0.0
    %171 = vmatpush2.msra.mxu0 %v85
    %172 = vmatprep.mubr.f32.mxu0 %v68
    %173 = vmatmul.mubr.f32.gmra.mxu0 %v67
    %v174 = vpop.f32.mrf.mxu0
    %v175 = vadd.f32 %v106, %v174
    %v176 = vpop.f32.mrf.mxu0
    %177 = vdwg.mxu0
    %v178 = vmax.f32 %v175, 0.0
    %v179 = vld [vmem:[#allocation4] sm:$0xff]
    %v180 = vld [vmem:[#allocation4 + $0x8] sm:$0xff]
    %v181 = vld [vmem:[#allocation4 + $0x10] sm:$0xff]
    %v182 = vld [vmem:[#allocation4 + $0x18] sm:$0xff]
    %v183 = vld [vmem:[#allocation4 + $0x20] sm:$0xff]
    %v184 = vld [vmem:[#allocation4 + $0x28] sm:$0xff]
    %v185 = vld [vmem:[#allocation4 + $0x30] sm:$0xff]
    %v186 = vld [vmem:[#allocation4 + $0x38] sm:$0xff]
    %v187 = vld [vmem:[#allocation4 + $0x40] sm:$0xff]
    %v188 = vld [vmem:[#allocation4 + $0x48] sm:$0xff]
    %v189 = vld [vmem:[#allocation4 + $0x50] sm:$0xff]
    %v190 = vld [vmem:[#allocation4 + $0x58] sm:$0xff]
    %v191 = vld [vmem:[#allocation4 + $0x60] sm:$0xff]
    %v192 = vld [vmem:[#allocation4 + $0x68] sm:$0xff]
    %v193 = vld [vmem:[#allocation4 + $0x70] sm:$0xff]
    %v194 = vld [vmem:[#allocation4 + $0x78] sm:$0xff]
    %v195 = vld [vmem:[%s4] sm:$0x1]
    %v197 = vlaneseq
    %v198 = vshrl.u32 %v197, 7
    %v199 = vsub.s32 0, %v198
    %v200 = vrot.slane %v195, %v199
    %202 = vmatprep.subr.mxu0 0.0
    %203 = vmatpush1.msra.mxu0 %v194
    %204 = vmatprep.subr.mxu0 0.0
    %205 = vmatpush1.msra.mxu0 %v193
    %206 = vmatprep.subr.mxu0 0.0
    %207 = vmatpush1.msra.mxu0 %v192
    %208 = vmatprep.subr.mxu0 0.0
    %209 = vmatpush1.msra.mxu0 %v191
    %210 = vmatprep.subr.mxu0 0.0
    %211 = vmatpush1.msra.mxu0 %v190
    %212 = vmatprep.subr.mxu0 0.0
    %213 = vmatpush1.msra.mxu0 %v189
    %214 = vmatprep.subr.mxu0 0.0
    %215 = vmatpush1.msra.mxu0 %v188
    %216 = vmatprep.subr.mxu0 0.0
    %217 = vmatpush1.msra.mxu0 %v187
    %218 = vmatprep.subr.mxu0 0.0
    %219 = vmatpush1.msra.mxu0 %v186
    %220 = vmatprep.subr.mxu0 0.0
    %221 = vmatpush1.msra.mxu0 %v185
    %222 = vmatprep.subr.mxu0 0.0
    %223 = vmatpush1.msra.mxu0 %v184
    %224 = vmatprep.subr.mxu0 0.0
    %225 = vmatpush1.msra.mxu0 %v183
    %226 = vmatprep.subr.mxu0 0.0
    %227 = vmatpush1.msra.mxu0 %v182
    %228 = vmatprep.subr.mxu0 0.0
    %229 = vmatpush1.msra.mxu0 %v181
    %230 = vmatprep.subr.mxu0 0.0
    %231 = vmatpush1.msra.mxu0 %v180
    %232 = vmatprep.subr.mxu0 0.0
    %233 = vmatpush1.msra.mxu0 %v179
    %234 = vmatprep.subr.mxu0 0.0
    %235 = vmatpush2.msra.mxu0 0.0
    %236 = vmatprep.subr.mxu0 0.0
    %237 = vmatpush2.msra.mxu0 0.0
    %238 = vmatprep.subr.mxu0 0.0
    %239 = vmatpush2.msra.mxu0 0.0
    %240 = vmatprep.subr.mxu0 0.0
    %241 = vmatpush2.msra.mxu0 0.0
    %242 = vmatprep.subr.mxu0 0.0
    %243 = vmatpush2.msra.mxu0 0.0
    %244 = vmatprep.subr.mxu0 0.0
    %245 = vmatpush2.msra.mxu0 0.0
    %246 = vmatprep.subr.mxu0 0.0
    %247 = vmatpush2.msra.mxu0 0.0
    %248 = vmatprep.subr.mxu0 0.0
    %249 = vmatpush2.msra.mxu0 0.0
    %250 = vmatprep.subr.mxu0 0.0
    %251 = vmatpush2.msra.mxu0 0.0
    %252 = vmatprep.subr.mxu0 0.0
    %253 = vmatpush2.msra.mxu0 0.0
    %254 = vmatprep.subr.mxu0 0.0
    %255 = vmatpush2.msra.mxu0 0.0
    %256 = vmatprep.subr.mxu0 0.0
    %257 = vmatpush2.msra.mxu0 0.0
    %258 = vmatprep.subr.mxu0 0.0
    %259 = vmatpush2.msra.mxu0 0.0
    %260 = vmatprep.subr.mxu0 0.0
    %261 = vmatpush2.msra.mxu0 0.0
    %262 = vmatprep.subr.mxu0 0.0
    %263 = vmatpush2.msra.mxu0 0.0
    %264 = vmatprep.subr.mxu0 0.0
    %265 = vmatpush2.msra.mxu0 0.0
    %266 = vmatprep.mubr.f32.mxu0 0.0
    %267 = vmatmul.mubr.f32.gmra.mxu0 %v178
    %v268 = vpop.f32.mrf.mxu0
    %v269 = vadd.f32 %v200, %v268
    %v270 = vpop.f32.mrf.mxu0
    %271 = vdwg.mxu0
    %v272 = vmax.f32 %v269, 0.0
    %v273 = vld [vmem:[#allocation6] sm:$0xff]
    %v274 = vld [vmem:[#allocation6 + $0x8] sm:$0xff]
    %v275 = vld [vmem:[#allocation6 + $0x10] sm:$0xff]
    %v276 = vld [vmem:[#allocation6 + $0x18] sm:$0xff]
    %v277 = vld [vmem:[#allocation6 + $0x20] sm:$0xff]
    %v278 = vld [vmem:[#allocation6 + $0x28] sm:$0xff]
    %v279 = vld [vmem:[#allocation6 + $0x30] sm:$0xff]
    %v280 = vld [vmem:[#allocation6 + $0x38] sm:$0xff]
    %v281 = vld [vmem:[#allocation6 + $0x40] sm:$0xff]
    %v282 = vld [vmem:[#allocation6 + $0x48] sm:$0xff]
    %v283 = vld [vmem:[#allocation6 + $0x50] sm:$0xff]
    %v284 = vld [vmem:[#allocation6 + $0x58] sm:$0xff]
    %v285 = vld [vmem:[#allocation6 + $0x60] sm:$0xff]
    %v286 = vld [vmem:[#allocation6 + $0x68] sm:$0xff]
    %v287 = vld [vmem:[#allocation6 + $0x70] sm:$0xff]
    %v288 = vld [vmem:[#allocation6 + $0x78] sm:$0xff]
    %v289 = vld [vmem:[%s6] sm:$0x1]
    %v291 = vlaneseq
    %v292 = vshrl.u32 %v291, 7
    %v293 = vsub.s32 0, %v292
    %v294 = vrot.slane %v289, %v293
    %296 = vmatprep.subr.mxu0 0.0
    %297 = vmatpush1.msra.mxu0 %v288
    %298 = vmatprep.subr.mxu0 0.0
    %299 = vmatpush1.msra.mxu0 %v287
    %300 = vmatprep.subr.mxu0 0.0
    %301 = vmatpush1.msra.mxu0 %v286
    %302 = vmatprep.subr.mxu0 0.0
    %303 = vmatpush1.msra.mxu0 %v285
    %304 = vmatprep.subr.mxu0 0.0
    %305 = vmatpush1.msra.mxu0 %v284
    %306 = vmatprep.subr.mxu0 0.0
    %307 = vmatpush1.msra.mxu0 %v283
    %308 = vmatprep.subr.mxu0 0.0
    %309 = vmatpush1.msra.mxu0 %v282
    %310 = vmatprep.subr.mxu0 0.0
    %311 = vmatpush1.msra.mxu0 %v281
    %312 = vmatprep.subr.mxu0 0.0
    %313 = vmatpush1.msra.mxu0 %v280
    %314 = vmatprep.subr.mxu0 0.0
    %315 = vmatpush1.msra.mxu0 %v279
    %316 = vmatprep.subr.mxu0 0.0
    %317 = vmatpush1.msra.mxu0 %v278
    %318 = vmatprep.subr.mxu0 0.0
    %319 = vmatpush1.msra.mxu0 %v277
    %320 = vmatprep.subr.mxu0 0.0
    %321 = vmatpush1.msra.mxu0 %v276
    %322 = vmatprep.subr.mxu0 0.0
    %323 = vmatpush1.msra.mxu0 %v275
    %324 = vmatprep.subr.mxu0 0.0
    %325 = vmatpush1.msra.mxu0 %v274
    %326 = vmatprep.subr.mxu0 0.0
    %327 = vmatpush1.msra.mxu0 %v273
    %328 = vmatprep.subr.mxu0 0.0
    %329 = vmatpush2.msra.mxu0 0.0
    %330 = vmatprep.subr.mxu0 0.0
    %331 = vmatpush2.msra.mxu0 0.0
    %332 = vmatprep.subr.mxu0 0.0
    %333 = vmatpush2.msra.mxu0 0.0
    %334 = vmatprep.subr.mxu0 0.0
    %335 = vmatpush2.msra.mxu0 0.0
    %336 = vmatprep.subr.mxu0 0.0
    %337 = vmatpush2.msra.mxu0 0.0
    %338 = vmatprep.subr.mxu0 0.0
    %339 = vmatpush2.msra.mxu0 0.0
    %340 = vmatprep.subr.mxu0 0.0
    %341 = vmatpush2.msra.mxu0 0.0
    %342 = vmatprep.subr.mxu0 0.0
    %343 = vmatpush2.msra.mxu0 0.0
    %344 = vmatprep.subr.mxu0 0.0
    %345 = vmatpush2.msra.mxu0 0.0
    %346 = vmatprep.subr.mxu0 0.0
    %347 = vmatpush2.msra.mxu0 0.0
    %348 = vmatprep.subr.mxu0 0.0
    %349 = vmatpush2.msra.mxu0 0.0
    %350 = vmatprep.subr.mxu0 0.0
    %351 = vmatpush2.msra.mxu0 0.0
    %352 = vmatprep.subr.mxu0 0.0
    %353 = vmatpush2.msra.mxu0 0.0
    %354 = vmatprep.subr.mxu0 0.0
    %355 = vmatpush2.msra.mxu0 0.0
    %356 = vmatprep.subr.mxu0 0.0
    %357 = vmatpush2.msra.mxu0 0.0
    %358 = vmatprep.subr.mxu0 0.0
    %359 = vmatpush2.msra.mxu0 0.0
    %360 = vmatprep.mubr.f32.mxu0 0.0
    %361 = vmatmul.mubr.f32.gmra.mxu0 %v272
    %v362 = vpop.f32.mrf.mxu0
    %v363 = vadd.f32 %v294, %v362
    %v364 = vpop.f32.mrf.mxu0
    %365 = vdwg.mxu0
    %366 = vst [vmem:[%s7] sm:$0xff] %v363
    // Predicated region
    $region42: #{_forward_impl.1} parent=1 // pred_check
      _
    $region43: #{_forward_impl.1} parent=1 // pred_check_branch
      %368 = sbr.rel (0) target = $region45
    $region44: #{_forward_impl.1} parent=1 // pred_region
      _
    $region45: #{_forward_impl.1} parent=1 // pred_fallthru
      _
    // Predicated region
    $region46: #{_forward_impl.1} parent=1 // pred_check
      _
    $region47: #{_forward_impl.1} parent=1 // pred_check_branch
      %370 = sbr.rel (0) target = $region49
    $region48: #{_forward_impl.1} parent=1 // pred_region
      _
    $region49: #{_forward_impl.1} parent=1 // pred_fallthru
      _
    %371 = vsyncpa [#allocation3], 1
    %372 = vsyncpa [#allocation5], 1

</llo_original>
